<compile_context>
chip_gen: v6e
topology: v6e:2x2x1
jax: 0.10.0
libtpu: 0.0.40
codegen_flags: <defaults>
</compile_context>

<pallas_src>
import functools

import jax
import jax.numpy as jnp
from jax import lax
from jax.experimental import pallas as pl
from jax.experimental.pallas import tpu as pltpu


def _uniform_bits(shape, col0, n_total, seed_u32):
    """Stateless per-element uniform uint32 bits (murmur3-finalizer mix)."""
    rows = lax.broadcasted_iota(jnp.int32, shape, 0).astype(jnp.uint32)
    cols = (lax.broadcasted_iota(jnp.int32, shape, 1) + col0).astype(jnp.uint32)
    x = rows * jnp.uint32(n_total) + cols
    x = x ^ (seed_u32 * jnp.uint32(0x9E3779B9) + jnp.uint32(0x85EBCA6B))
    x = (x ^ (x >> 16)) * jnp.uint32(0x7FEB352D)
    x = (x ^ (x >> 15)) * jnp.uint32(0x846CA68B)
    x = x ^ (x >> 16)
    return x


def _downblock_kernel(seed_ref, x_ref, w_ref, b_ref, g_ref, bt_ref, out_ref, *,
                      dropout_rate, eps, tile_n, n_total, batch):
    j = pl.program_id(0)

    # ---- Linear (MXU, bf16 inputs, f32 accumulation) + bias + ReLU ----
    h = lax.dot_general(
        x_ref[...], w_ref[...],
        dimension_numbers=(((1,), (1,)), ((), ())),   # x (B,K) . W (N,K) over K
        preferred_element_type=jnp.float32)           # (B, tile_n) f32
    r = jnp.maximum(h + b_ref[...], 0.0)

    # ---- BatchNorm1d, training-mode batch statistics, one elementwise pass ---
    inv_b = 1.0 / batch
    s1 = jnp.sum(r, axis=0, keepdims=True)
    s2 = jnp.sum(r * r, axis=0, keepdims=True)
    mu = s1 * inv_b
    var = jnp.maximum(s2 * inv_b - mu * mu, 0.0)       # biased variance
    y = (r - mu) * (lax.rsqrt(var + eps) * g_ref[...]) + bt_ref[...]

    # ---- Dropout (inverted), stateless hash RNG, integer-compare keep mask ---
    if dropout_rate > 0.0:
        seed_u32 = seed_ref[0].astype(jnp.uint32)
        bits = _uniform_bits(r.shape, j * tile_n, n_total, seed_u32)
        thresh = jnp.uint32(min(int(dropout_rate * (1 << 32)), (1 << 32) - 1))
        keep = bits >= thresh                          # P(keep) = 1 - p
        y = jnp.where(keep, y * (1.0 / (1.0 - dropout_rate)), 0.0)

    out_ref[...] = y.astype(out_ref.dtype)


def _round_up(x, m):
    return (x + m - 1) // m * m


def downblock_forward(x, w, b, gamma, beta, seed, *, dropout_rate, eps=1e-5):
    """x: (B, in_dim). w: (out_dim, in_dim) (PyTorch Linear layout)."""
    batch, in_dim = x.shape
    out_dim = w.shape[0]

    # Lane-dense feature tiling: pad out_dim to a multiple of 128 and use the
    # largest tile in {512, 256, 128} that divides it.  Per-step VMEM footprint
    # is x + 2x weight panel + 2x output tile, sized to fit the scoped limit
    # set below (tight constraint is v7x's 64 MiB physical VMEM).
    n_pad = _round_up(out_dim, 128)
    tile_n = next(t for t in (512, 256, 128) if n_pad % t == 0)
    pad = n_pad - out_dim

    w = jnp.asarray(w, jnp.float32)
    b = jnp.asarray(b, jnp.float32)
    gamma = jnp.asarray(gamma, jnp.float32)
    beta = jnp.asarray(beta, jnp.float32)
    if pad:
        w = jnp.pad(w, ((0, pad), (0, 0)))
        b = jnp.pad(b, (0, pad))
        gamma = jnp.pad(gamma, (0, pad), constant_values=1.0)
        beta = jnp.pad(beta, (0, pad))

    # bf16 matmul operands (f32 accumulation in-kernel); per-feature params f32.
    x_bf = jnp.asarray(x, jnp.bfloat16)
    w_bf = w.astype(jnp.bfloat16)     # stays (n_pad, in_dim): no HBM transpose
    b2 = b.reshape(1, n_pad)
    g2 = gamma.reshape(1, n_pad)
    be2 = beta.reshape(1, n_pad)
    seed_arr = jnp.asarray([seed], jnp.int32)

    kernel = functools.partial(
        _downblock_kernel, dropout_rate=float(dropout_rate), eps=float(eps),
        tile_n=tile_n, n_total=n_pad, batch=batch)

    out = pl.pallas_call(
        kernel,
        out_shape=jax.ShapeDtypeStruct((batch, n_pad), jnp.float32),
        grid_spec=pltpu.PrefetchScalarGridSpec(
            num_scalar_prefetch=1,                      # dropout seed in SMEM
            grid=(n_pad // tile_n,),
            in_specs=[
                pl.BlockSpec((batch, in_dim), lambda j, seed: (0, 0)),   # x resident
                pl.BlockSpec((tile_n, in_dim), lambda j, seed: (j, 0)),  # W panel
                pl.BlockSpec((1, tile_n), lambda j, seed: (0, j)),       # bias
                pl.BlockSpec((1, tile_n), lambda j, seed: (0, j)),       # gamma
                pl.BlockSpec((1, tile_n), lambda j, seed: (0, j)),       # beta
            ],
            out_specs=pl.BlockSpec((batch, tile_n), lambda j, seed: (0, j)),
        ),
        compiler_params=pltpu.CompilerParams(
            dimension_semantics=("parallel",),          # shard tiles across TCs
            vmem_limit_bytes=48 * 1024 * 1024,          # > 32MiB default, headroom on v7x
        ),
    )(seed_arr, x_bf, w_bf, b2, g2, be2)

    # TODO(synk): if batch*in_dim no longer fits VMEM, tile the batch axis as an
    # "arbitrary" reduction with per-feature sum/sumsq accumulators (BN needs
    # full-batch statistics); this version keeps the whole x resident.
    return out[:, :out_dim] if pad else out


def _reference_no_dropout(x, w, b, gamma, beta, eps=1e-5):
    """Pure-JAX reference (bf16 matmul inputs to match the kernel)."""
    h = lax.dot_general(x.astype(jnp.bfloat16), w.astype(jnp.bfloat16),
                        dimension_numbers=(((1,), (1,)), ((), ())),
                        preferred_element_type=jnp.float32) + b[None, :]
    r = jnp.maximum(h, 0.0)
    mu = jnp.mean(r, axis=0, keepdims=True)
    var = jnp.mean((r - mu) ** 2, axis=0, keepdims=True)
    return (r - mu) * lax.rsqrt(var + eps) * gamma[None, :] + beta[None, :]


def _init_params(key, in_dim, out_dim):
    """Deterministic PyTorch-style Linear init; BN gamma=1, beta=0."""
    kw, kb = jax.random.split(key)
    bound = 1.0 / jnp.sqrt(jnp.float32(in_dim))
    w = jax.random.uniform(kw, (out_dim, in_dim), jnp.float32, -bound, bound)
    b = jax.random.uniform(kb, (out_dim,), jnp.float32, -bound, bound)
    gamma = jnp.ones((out_dim,), jnp.float32)
    beta = jnp.zeros((out_dim,), jnp.float32)
    return w, b, gamma, beta


if __name__ == "__main__":
    batch, in_dim, out_dim = 8, 32, 32
    dropout_rate = 0.1

    key = jax.random.PRNGKey(0)
    kx, kp = jax.random.split(key)
    x = jax.random.normal(kx, (batch, in_dim), jnp.float32)
    w, b, gamma, beta = _init_params(kp, in_dim, out_dim)

    # Deterministic path (dropout off): check against pure-JAX reference.
    out_nd = jax.block_until_ready(
        downblock_forward(x, w, b, gamma, beta, seed=0, dropout_rate=0.0))
    ref_nd = _reference_no_dropout(x, w, b, gamma, beta)
    assert out_nd.shape == (batch, out_dim) and out_nd.dtype == jnp.float32
    assert float(jnp.max(jnp.abs(out_nd - ref_nd))) < 1e-2

    # Full forward with dropout: shape/dtype + determinism for a fixed seed.
    out1 = jax.block_until_ready(
        downblock_forward(x, w, b, gamma, beta, seed=1234,
                          dropout_rate=dropout_rate))
    out2 = jax.block_until_ready(
        downblock_forward(x, w, b, gamma, beta, seed=1234,
                          dropout_rate=dropout_rate))
    assert out1.shape == (batch, out_dim) and out1.dtype == jnp.float32
    assert bool(jnp.all(out1 == out2))

    print("KERNEL_OK")
</pallas_src>

<mosaic_0001>
module attributes {stable_mosaic.version = 11 : i64} {
  func.func @_downblock_kernel(%arg0: i32, %arg1: memref<1xi32, #tpu.memory_space<smem>>, %arg2: memref<8x32xbf16, #tpu.memory_space<vmem>>, %arg3: memref<128x32xbf16, #tpu.memory_space<vmem>>, %arg4: memref<1x128xf32, #tpu.memory_space<vmem>>, %arg5: memref<1x128xf32, #tpu.memory_space<vmem>>, %arg6: memref<1x128xf32, #tpu.memory_space<vmem>>, %arg7: memref<8x128xf32, #tpu.memory_space<vmem>>) attributes {dimension_semantics = [#tpu.dimension_semantics<parallel>], iteration_bounds = array<i64: 1>, scalar_prefetch = 1 : i64, scratch_operands = 0 : i64, tpu.core_type = #tpu.core_type<tc>, window_params = [{pipeline_mode = #tpu.pipeline_mode<synchronous>, transform_indices = @transform_0, window_bounds = array<i64: 8, 32>}, {transform_indices = @transform_1, window_bounds = array<i64: 128, 32>}, {transform_indices = @transform_2, window_bounds = array<i64: 1, 128>}, {transform_indices = @transform_3, window_bounds = array<i64: 1, 128>}, {transform_indices = @transform_4, window_bounds = array<i64: 1, 128>}, {transform_indices = @transform_5, window_bounds = array<i64: 8, 128>}]} {
    %c0 = arith.constant 0 : index
    %c0_0 = arith.constant 0 : index
    %0 = vector.load %arg2[%c0, %c0_0] : memref<8x32xbf16, #tpu.memory_space<vmem>>, vector<8x32xbf16>
    %c0_1 = arith.constant 0 : index
    %c0_2 = arith.constant 0 : index
    %1 = vector.load %arg3[%c0_1, %c0_2] : memref<128x32xbf16, #tpu.memory_space<vmem>>, vector<128x32xbf16>
    %cst = arith.constant dense<0.000000e+00> : vector<8x128xf32>
    %2 = tpu.matmul %0, %1, %cst {dimension_numbers = #tpu.dot_dimension_numbers<[1], [1], [0], [0], [0, 0, 1, 0], [], []>} : vector<8x32xbf16>, vector<128x32xbf16>, vector<8x128xf32> -> vector<8x128xf32>
    %c0_3 = arith.constant 0 : index
    %c0_4 = arith.constant 0 : index
    %3 = vector.load %arg4[%c0_3, %c0_4] : memref<1x128xf32, #tpu.memory_space<vmem>>, vector<1x128xf32>
    %4 = vector.broadcast %3 : vector<1x128xf32> to vector<8x128xf32>
    %5 = arith.addf %2, %4 : vector<8x128xf32>
    %cst_5 = arith.constant 0.000000e+00 : f32
    %6 = vector.broadcast %cst_5 : f32 to vector<8x128xf32>
    %7 = arith.maximumf %5, %6 : vector<8x128xf32>
    %cst_6 = arith.constant dense<0.000000e+00> : vector<128xf32>
    %8 = vector.multi_reduction <add>, %7, %cst_6 [0] : vector<8x128xf32> to vector<128xf32>
    %9 = vector.shape_cast %8 : vector<128xf32> to vector<1x128xf32>
    %10 = arith.mulf %7, %7 : vector<8x128xf32>
    %cst_7 = arith.constant dense<0.000000e+00> : vector<128xf32>
    %11 = vector.multi_reduction <add>, %10, %cst_7 [0] : vector<8x128xf32> to vector<128xf32>
    %12 = vector.shape_cast %11 : vector<128xf32> to vector<1x128xf32>
    %cst_8 = arith.constant 1.250000e-01 : f32
    %13 = vector.broadcast %cst_8 : f32 to vector<1x128xf32>
    %14 = arith.mulf %9, %13 : vector<1x128xf32>
    %cst_9 = arith.constant 1.250000e-01 : f32
    %15 = vector.broadcast %cst_9 : f32 to vector<1x128xf32>
    %16 = arith.mulf %12, %15 : vector<1x128xf32>
    %17 = arith.mulf %14, %14 : vector<1x128xf32>
    %18 = arith.subf %16, %17 : vector<1x128xf32>
    %cst_10 = arith.constant 0.000000e+00 : f32
    %19 = vector.broadcast %cst_10 : f32 to vector<1x128xf32>
    %20 = arith.maximumf %18, %19 : vector<1x128xf32>
    %21 = vector.broadcast %14 : vector<1x128xf32> to vector<8x128xf32>
    %22 = arith.subf %7, %21 : vector<8x128xf32>
    %cst_11 = arith.constant 9.99999974E-6 : f32
    %23 = vector.broadcast %cst_11 : f32 to vector<1x128xf32>
    %24 = arith.addf %20, %23 : vector<1x128xf32>
    %25 = math.rsqrt %24 : vector<1x128xf32>
    %c0_12 = arith.constant 0 : index
    %c0_13 = arith.constant 0 : index
    %26 = vector.load %arg5[%c0_12, %c0_13] : memref<1x128xf32, #tpu.memory_space<vmem>>, vector<1x128xf32>
    %27 = arith.mulf %25, %26 : vector<1x128xf32>
    %28 = vector.broadcast %27 : vector<1x128xf32> to vector<8x128xf32>
    %29 = arith.mulf %22, %28 : vector<8x128xf32>
    %c0_14 = arith.constant 0 : index
    %c0_15 = arith.constant 0 : index
    %30 = vector.load %arg6[%c0_14, %c0_15] : memref<1x128xf32, #tpu.memory_space<vmem>>, vector<1x128xf32>
    %31 = vector.broadcast %30 : vector<1x128xf32> to vector<8x128xf32>
    %32 = arith.addf %29, %31 : vector<8x128xf32>
    %c0_16 = arith.constant 0 : index
    %c0_17 = arith.constant 0 : index
    %33 = vector.load %arg7[%c0_16, %c0_17] : memref<8x128xf32, #tpu.memory_space<vmem>>, vector<8x128xf32>
    tpu.vector_store %arg7[%c0_16, %c0_17], %32 {strides = array<i32>} : memref<8x128xf32, #tpu.memory_space<vmem>>, vector<8x128xf32>,
    return
  }
  func.func @transform_0(%arg0: i32, %arg1: memref<1xi32, #tpu.memory_space<smem>>) -> (i32, i32) {
    %c0_i32 = arith.constant 0 : i32
    %c0_i32_0 = arith.constant 0 : i32
    %c0_i32_1 = arith.constant 0 : i32
    return %c0_i32, %c0_i32_0 : i32, i32
  }
  func.func @transform_1(%arg0: i32, %arg1: memref<1xi32, #tpu.memory_space<smem>>) -> (i32, i32) {
    %c0_i32 = arith.constant 0 : i32
    %c0_i32_0 = arith.constant 0 : i32
    return %arg0, %c0_i32 : i32, i32
  }
  func.func @transform_2(%arg0: i32, %arg1: memref<1xi32, #tpu.memory_space<smem>>) -> (i32, i32) {
    %c0_i32 = arith.constant 0 : i32
    %c0_i32_0 = arith.constant 0 : i32
    return %c0_i32, %arg0 : i32, i32
  }
  func.func @transform_3(%arg0: i32, %arg1: memref<1xi32, #tpu.memory_space<smem>>) -> (i32, i32) {
    %c0_i32 = arith.constant 0 : i32
    %c0_i32_0 = arith.constant 0 : i32
    return %c0_i32, %arg0 : i32, i32
  }
  func.func @transform_4(%arg0: i32, %arg1: memref<1xi32, #tpu.memory_space<smem>>) -> (i32, i32) {
    %c0_i32 = arith.constant 0 : i32
    %c0_i32_0 = arith.constant 0 : i32
    return %c0_i32, %arg0 : i32, i32
  }
  func.func @transform_5(%arg0: i32, %arg1: memref<1xi32, #tpu.memory_space<smem>>) -> (i32, i32) {
    %c0_i32 = arith.constant 0 : i32
    %c0_i32_0 = arith.constant 0 : i32
    return %c0_i32, %arg0 : i32, i32
  }
}

</mosaic_0001>

<llo_original>
// kernel: tpu_custom_call.1
$region0: #{tpu_custom_call.1}
  #allocation0 [shape = 'u32[]', space=smem, size = 0x4, offset = 0x4, fixed_abs, tag = 'smem constant byte address 0x4 - core index']
  #allocation1 [shape = 'u32[144,128]{1,0:T(1,128)}', space=vmem, size = 0x12000, scoped, tag = 'internal scratch']
  #allocation2 [shape = 's32[1]{0}', space=sflag, size = 0x4, scoped, tag = 'scoped memory for tpu_custom_call.1']
  #allocation3 [shape = 's32[1]{0:T(128)S(6)}', space=smem, size = 0x200, scoped, tag = 'prefetched SMEM operand 0']
  %s0 = inlined_call_operand.<no memory space> [shape: s32[1], index: 0, kind: input, shape index: {}]
  %s1 = inlined_call_operand.vmem [shape: bf16[8,32], index: 1, kind: input, shape index: {}]
  %s2 = inlined_call_operand.vmem [shape: bf16[128,32], index: 2, kind: input, shape index: {}]
  %s3 = inlined_call_operand.vmem [shape: f32[1,128], index: 3, kind: input, shape index: {}]
  %s4 = inlined_call_operand.vmem [shape: f32[1,128], index: 4, kind: input, shape index: {}]
  %s5 = inlined_call_operand.vmem [shape: f32[1,128], index: 5, kind: input, shape index: {}]
  %s6 = inlined_call_operand.hbm [shape: f32[8,128], index: 6, kind: output, shape index: {}]
  %s7 = sld [smem:[#allocation0]]
  $region30: #{tpu_custom_call.1} parent=0
    _
  %s9 = ssub.s32 1, %s7
  %s10 = scalar_select 0, %s9, %s7
  %11 = sst [smem:[#allocation3]] %s0
  $region1: #{tpu_custom_call.1} parent=0
    #allocation4 [shape = 'u8[4096]{0}', space=vmem, size = 0x1000, scoped, tag = 'output window, operand 0, single buffered']
    #allocation5 [shape = 's32[1]{0}', space=sflag, size = 0x4, scoped, tag = 'scoped memory for tpu_custom_call.1']
    %12 = vsyncpa [#allocation5], 0
    // Predicated region
    $region2: #{tpu_custom_call.1} parent=1 // pred_check
      _
    $region3: #{tpu_custom_call.1} parent=1 // pred_check_branch
      %14 = sbr.rel (0) target = $region5
    $region4: #{tpu_custom_call.1} parent=1 // pred_region
      _
    $region5: #{tpu_custom_call.1} parent=1 // pred_fallthru
      _
    // Predicated region
    $region6: #{tpu_custom_call.1} parent=1 // pred_check
      _
    $region7: #{tpu_custom_call.1} parent=1 // pred_check_branch
      %16 = sbr.rel (0) target = $region9
    $region8: #{tpu_custom_call.1} parent=1 // pred_region
      _
    $region9: #{tpu_custom_call.1} parent=1 // pred_fallthru
      _
    // Predicated region
    $region10: #{tpu_custom_call.1} parent=1 // pred_check
      _
    $region11: #{tpu_custom_call.1} parent=1 // pred_check_branch
      %18 = sbr.rel (0) target = $region13
    $region12: #{tpu_custom_call.1} parent=1 // pred_region
      _
    $region13: #{tpu_custom_call.1} parent=1 // pred_fallthru
      _
    // Predicated region
    $region14: #{tpu_custom_call.1} parent=1 // pred_check
      _
    $region15: #{tpu_custom_call.1} parent=1 // pred_check_branch
      %20 = sbr.rel (0) target = $region17
    $region16: #{tpu_custom_call.1} parent=1 // pred_region
      _
    $region17: #{tpu_custom_call.1} parent=1 // pred_fallthru
      _
    // Predicated region
    $region18: #{tpu_custom_call.1} parent=1 // pred_check
      _
    $region19: #{tpu_custom_call.1} parent=1 // pred_check_branch
      %22 = sbr.rel (0) target = $region21
    $region20: #{tpu_custom_call.1} parent=1 // pred_region
      _
    $region21: #{tpu_custom_call.1} parent=1 // pred_fallthru
      _
    %v24 = vld [vmem:[%s1] sm:$0xf]
    %v25 = vld [vmem:[%s2] sm:$0xf]
    %v26 = vld [vmem:[%s2 + $0x4] sm:$0xf]
    %v27 = vld [vmem:[%s2 + $0x8] sm:$0xf]
    %v28 = vld [vmem:[%s2 + $0xc] sm:$0xf]
    %v29 = vld [vmem:[%s2 + $0x10] sm:$0xf]
    %v30 = vld [vmem:[%s2 + $0x14] sm:$0xf]
    %v31 = vld [vmem:[%s2 + $0x18] sm:$0xf]
    %v32 = vld [vmem:[%s2 + $0x1c] sm:$0xf]
    %v33 = vld [vmem:[%s2 + $0x20] sm:$0xf]
    %v34 = vld [vmem:[%s2 + $0x24] sm:$0xf]
    %v35 = vld [vmem:[%s2 + $0x28] sm:$0xf]
    %v36 = vld [vmem:[%s2 + $0x2c] sm:$0xf]
    %v37 = vld [vmem:[%s2 + $0x30] sm:$0xf]
    %v38 = vld [vmem:[%s2 + $0x34] sm:$0xf]
    %v39 = vld [vmem:[%s2 + $0x38] sm:$0xf]
    %v40 = vld [vmem:[%s2 + $0x3c] sm:$0xf]
    %v41 = vld [vmem:[%s3] sm:$0x1]
    %v43 = vlaneseq
    %v44 = vshrl.u32 %v43, 7
    %v45 = vsub.s32 0, %v44
    %v46 = vrot.slane %v41, %v45
    %v64 = vunpack.c.l.b16 %v25
    %v65 = vunpack.c.l.b16 %v26
    %v66 = vunpack.c.l.b16 %v27
    %v67 = vunpack.c.l.b16 %v28
    %v68 = vunpack.c.l.b16 %v29
    %v69 = vunpack.c.l.b16 %v30
    %v70 = vunpack.c.l.b16 %v31
    %v71 = vunpack.c.l.b16 %v32
    %v72 = vunpack.c.l.b16 %v33
    %v73 = vunpack.c.l.b16 %v34
    %v74 = vunpack.c.l.b16 %v35
    %v75 = vunpack.c.l.b16 %v36
    %v76 = vunpack.c.l.b16 %v37
    %v77 = vunpack.c.l.b16 %v38
    %v78 = vunpack.c.l.b16 %v39
    %v79 = vunpack.c.l.b16 %v40
    %v80 = vpack.c.b16 %v65, %v64
    %v81 = vpack.c.b16 %v67, %v66
    %v82 = vpack.c.b16 %v69, %v68
    %v83 = vpack.c.b16 %v71, %v70
    %v84 = vpack.c.b16 %v73, %v72
    %v85 = vpack.c.b16 %v75, %v74
    %v86 = vpack.c.b16 %v77, %v76
    %v87 = vpack.c.b16 %v79, %v78
    %vm88 = vcmask 261120
    %v90 = vsel %vm88, %v24, 0
    %v93 = vsel %vm88, %v80, 0
    %v96 = vsel %vm88, %v81, 0
    %v99 = vsel %vm88, %v82, 0
    %v102 = vsel %vm88, %v83, 0
    %v105 = vsel %vm88, %v84, 0
    %v108 = vsel %vm88, %v85, 0
    %v111 = vsel %vm88, %v86, 0
    %v114 = vsel %vm88, %v87, 0
    %116 = vmatprep.subr.bf16.mxu0 0
    %117 = vmatpush1.bf16.xpose.msra.mxu0 %v114
    %118 = vmatprep.subr.bf16.mxu0 0
    %119 = vmatpush1.bf16.xpose.msra.mxu0 %v111
    %120 = vmatprep.subr.bf16.mxu0 0
    %121 = vmatpush1.bf16.xpose.msra.mxu0 %v108
    %122 = vmatprep.subr.bf16.mxu0 0
    %123 = vmatpush1.bf16.xpose.msra.mxu0 %v105
    %124 = vmatprep.subr.bf16.mxu0 0
    %125 = vmatpush1.bf16.xpose.msra.mxu0 %v102
    %126 = vmatprep.subr.bf16.mxu0 0
    %127 = vmatpush1.bf16.xpose.msra.mxu0 %v99
    %128 = vmatprep.subr.bf16.mxu0 0
    %129 = vmatpush1.bf16.xpose.msra.mxu0 %v96
    %130 = vmatprep.subr.bf16.mxu0 0
    %131 = vmatpush1.bf16.xpose.msra.mxu0 %v93
    %132 = vmatprep.subr.bf16.mxu0 0
    %133 = vmatpush2.bf16.xpose.msra.mxu0 0
    %134 = vmatprep.subr.bf16.mxu0 0
    %135 = vmatpush2.bf16.xpose.msra.mxu0 0
    %136 = vmatprep.subr.bf16.mxu0 0
    %137 = vmatpush2.bf16.xpose.msra.mxu0 0
    %138 = vmatprep.subr.bf16.mxu0 0
    %139 = vmatpush2.bf16.xpose.msra.mxu0 0
    %140 = vmatprep.subr.bf16.mxu0 0
    %141 = vmatpush2.bf16.xpose.msra.mxu0 0
    %142 = vmatprep.subr.bf16.mxu0 0
    %143 = vmatpush2.bf16.xpose.msra.mxu0 0
    %144 = vmatprep.subr.bf16.mxu0 0
    %145 = vmatpush2.bf16.xpose.msra.mxu0 0
    %146 = vmatprep.subr.bf16.mxu0 0
    %147 = vmatpush2.bf16.xpose.msra.mxu0 0
    %148 = vmatprep.mubr.bf16.mxu0 0
    %149 = vmatmul.mubr.bf16.gmra.mxu0 %v90
    %v150 = vpop.f32.mrf.mxu0
    %v151 = vadd.f32 %v46, %v150
    %v152 = vpop.f32.mrf.mxu0
    %v153 = vpop.f32.mrf.mxu0
    %v154 = vpop.f32.mrf.mxu0
    %155 = vdwg.mxu0
    %v156 = vmax.f32 %v151, 0.0
    %v157 = vrot.slane %v156, 4
    %v158 = vadd.f32 %v156, %v157
    %v159 = vrot.slane %v158, 2
    %v160 = vadd.f32 %v158, %v159
    %v161 = vrot.slane %v160, 1
    %v162 = vadd.f32 %v160, %v161
    %v163 = vmul.f32 %v156, %v156
    %v164 = vrot.slane %v163, 4
    %v165 = vadd.f32 %v163, %v164
    %v166 = vrot.slane %v165, 2
    %v167 = vadd.f32 %v165, %v166
    %v168 = vrot.slane %v167, 1
    %v169 = vadd.f32 %v167, %v168
    %v170 = vmul.f32 %v162, 0.125
    %v171 = vmul.f32 %v169, 0.125
    %v172 = vmul.f32 %v170, %v170
    %v173 = vsub.f32 %v171, %v172
    %v174 = vmax.f32 %v173, 0.0
    %v175 = vsub.f32 %v156, %v170
    %v176 = vadd.f32 %v174, 1e-05
    %v177 = vrsqrt.pop %v176
    %v178 = vld [vmem:[%s4] sm:$0x1]
    %v179 = vmul.f32 %v177, %v178
    %v180 = vlaneseq
    %v181 = vshrl.u32 %v180, 7
    %v182 = vsub.s32 0, %v181
    %v183 = vrot.slane %v179, %v182
    %v184 = vmul.f32 %v175, %v183
    %v185 = vld [vmem:[%s5] sm:$0x1]
    %v187 = vlaneseq
    %v188 = vshrl.u32 %v187, 7
    %v189 = vsub.s32 0, %v188
    %v190 = vrot.slane %v185, %v189
    %v192 = vadd.f32 %v184, %v190
    %193 = vst [vmem:[#allocation4] sm:$0xff] %v192
    // Predicated region
    $region22: #{tpu_custom_call.1} parent=1 // pred_check
      _
    $region23: #{tpu_custom_call.1} parent=1 // pred_check_branch
      %195 = sbr.rel (0) target = $region25
    $region24: #{tpu_custom_call.1} parent=1 // pred_region
      %s197 = ssub.s32 128, 128
      %198 = vsyncadd [#allocation5], %s197
      %s200 = sshll.u32 [#allocation4], 4
      %s201 = int_to_ptr.vmem [resolvable:$true] %s200
      %203 = dma.vmem_to_hbm [thread:$0]  %s201, 128, %s6, [#allocation5]
    $region25: #{tpu_custom_call.1} parent=1 // pred_fallthru
      _
    // Predicated region
    $region26: #{tpu_custom_call.1} parent=1 // pred_check
      _
    $region27: #{tpu_custom_call.1} parent=1 // pred_check_branch
      %205 = sbr.rel (0) target = $region29
    $region28: #{tpu_custom_call.1} parent=1 // pred_region
      %206 = dma.done [#allocation5], 128
    $region29: #{tpu_custom_call.1} parent=1 // pred_fallthru
      _
    %207 = vsyncpa [#allocation5], 1

</llo_original>
